<compile_context>
chip_gen: v6e
topology: v6e:2x2x1
jax: 0.10.0
libtpu: 0.0.40
codegen_flags: <defaults>
</compile_context>

<pallas_src>
import jax
import jax.numpy as jnp
from jax.experimental import pallas as pl
from jax.experimental.pallas import tpu as pltpu


def attention_kernel(x_ref, wT_ref, bw_ref, u_ref, o_ref):
    TB, S, I = x_ref.shape
    H = wT_ref.shape[1]

    x = x_ref[...]                                   # (TB, S, I)

    # One big MXU matmul over all TB*S rows:  h = tanh(x @ W^T + b_w)
    x2 = x.reshape(TB * S, I)
    h = jnp.tanh(
        jnp.dot(x2, wT_ref[...], preferred_element_type=jnp.float32)
        + bw_ref[...]
    )                                                # (TB*S, H) f32

    # Width-1 "matmul" as VPU multiply + lane reduction (MXU would waste a
    # 256-wide result path on 1 useful lane).  b_u cancels in the softmax.
    s = jnp.sum(h.reshape(TB, S, H) * u_ref[...], axis=-1)   # (TB, S)

    # Softmax over the sequence axis (last axis here, lane-dense).
    m = jnp.max(s, axis=-1, keepdims=True)
    e = jnp.exp(s - m)
    a = e * pl.reciprocal(jnp.sum(e, axis=-1, keepdims=True), approx=False)

    # Weighted sum over S as a batched (1, S) @ (S, I) contraction on the
    # (otherwise idle) MXU rather than a broadcast-mul + sublane reduce.
    out = jnp.einsum(
        "bqs,bsi->bqi",
        a[:, None, :],
        x.astype(jnp.float32),
        preferred_element_type=jnp.float32,
    )[:, 0, :]                                       # (TB, I)

    o_ref[...] = out.astype(o_ref.dtype)


def _pick_batch_tile(B, S, I, itemsize=4):
    """Largest batch tile whose x-block stays ~2 MiB (double-buffer friendly)."""
    budget = 2 * 1024 * 1024
    tb = max(1, budget // max(1, S * I * itemsize))
    tb = int(min(tb, 128))
    if B <= tb:
        return B
    return max(8, (tb // 8) * 8)   # multiple of 8 -> sublane-dense out stores


def attention_layer(x, w, b_w, u, b_u=None):
    """x: (B, S, I); w: (H, I); b_w: (H,); u: (1, H); b_u: (1,) -> (B, I).

    Note: b_u is accepted for API parity with the PyTorch module but is not
    used — adding a constant before softmax over the same axis cancels.
    """
    B, S, I = x.shape
    H = w.shape[0]

    # Batch TB rows per grid step.  Pad B up to a multiple of TB (zero rows
    # are harmless: their softmax is finite and they multiply zero inputs)
    # and slice back at the end.
    TB = _pick_batch_tile(B, S, I)
    Bp = pl.cdiv(B, TB) * TB
    x_in = jnp.pad(x, ((0, Bp - B), (0, 0), (0, 0))) if Bp != B else x

    wT = jnp.asarray(w, jnp.float32).T                 # (I, H) feeds the MXU
    bw = jnp.asarray(b_w, jnp.float32).reshape(1, H)   # (1, H)
    u_row = jnp.asarray(u, jnp.float32).reshape(1, H)  # (1, H) row for VPU mul

    itemsize = jnp.dtype(jnp.float32).itemsize
    cost = pl.CostEstimate(
        flops=2 * Bp * S * I * H + 2 * Bp * S * H + 2 * Bp * S * I,
        transcendentals=Bp * S * H + Bp * S,           # tanh + exp
        bytes_accessed=(x_in.size + Bp * I + wT.size + bw.size + u_row.size)
        * itemsize,
    )

    out = pl.pallas_call(
        attention_kernel,
        out_shape=jax.ShapeDtypeStruct((Bp, I), x.dtype),
        grid_spec=pltpu.PrefetchScalarGridSpec(
            num_scalar_prefetch=0,
            grid=(Bp // TB,),
            in_specs=[
                pl.BlockSpec((TB, S, I), lambda b: (b, 0, 0)),
                pl.BlockSpec((I, H), lambda b: (0, 0)),
                pl.BlockSpec((1, H), lambda b: (0, 0)),
                pl.BlockSpec((1, H), lambda b: (0, 0)),
            ],
            out_specs=pl.BlockSpec((TB, I), lambda b: (b, 0)),
        ),
        compiler_params=pltpu.CompilerParams(
            dimension_semantics=("parallel",),
        ),
        cost_estimate=cost,
    )(x_in, wT, bw, u_row)

    return out[:B]


def attention_layer_ref(x, w, b_w, u, b_u):
    """Plain-JAX reference mirroring the PyTorch module (keeps b_u)."""
    h = jnp.tanh(jnp.einsum("bsi,hi->bsh", x, w) + b_w)       # (B, S, H)
    s = jnp.einsum("bsh,oh->bso", h, u) + b_u                  # (B, S, 1)
    a = jax.nn.softmax(s, axis=1)                              # (B, S, 1)
    return jnp.sum(a * x, axis=1)                              # (B, I)


if __name__ == "__main__":
    B, S, I, H = 2, 8, 32, 16   # batch, seq_len, input_size, hidden_size

    key = jax.random.PRNGKey(0)
    kx, kw, kbw, ku, kbu = jax.random.split(key, 5)

    x = jax.random.normal(kx, (B, S, I), dtype=jnp.float32)

    # Deterministic "Linear" parameters (PyTorch shapes: w (H, I), u (1, H)).
    w = jax.random.normal(kw, (H, I), dtype=jnp.float32) * 0.1
    b_w = jax.random.normal(kbw, (H,), dtype=jnp.float32) * 0.1
    u = jax.random.normal(ku, (1, H), dtype=jnp.float32) * 0.1
    b_u = jax.random.normal(kbu, (1,), dtype=jnp.float32) * 0.1

    out = attention_layer(x, w, b_w, u, b_u)
    out = jax.block_until_ready(out)

    ref = attention_layer_ref(x, w, b_w, u, b_u)
    assert out.shape == (B, I)
    assert jnp.allclose(out, ref, atol=1e-5, rtol=1e-5), (out, ref)

    print("KERNEL_OK")
</pallas_src>

<mosaic_0001>
module attributes {stable_mosaic.version = 11 : i64} {
  func.func @attention_kernel(%arg0: i32, %arg1: memref<2x8x32xf32, #tpu.memory_space<vmem>>, %arg2: memref<32x16xf32, #tpu.memory_space<vmem>>, %arg3: memref<1x16xf32, #tpu.memory_space<vmem>>, %arg4: memref<1x16xf32, #tpu.memory_space<vmem>>, %arg5: memref<2x32xf32, #tpu.memory_space<vmem>>) attributes {dimension_semantics = [#tpu.dimension_semantics<parallel>], iteration_bounds = array<i64: 1>, scalar_prefetch = 0 : i64, scratch_operands = 0 : i64, tpu.core_type = #tpu.core_type<tc>, window_params = [{transform_indices = @transform_0, window_bounds = array<i64: 2, 8, 32>}, {pipeline_mode = #tpu.pipeline_mode<synchronous>, transform_indices = @transform_1, window_bounds = array<i64: 32, 16>}, {pipeline_mode = #tpu.pipeline_mode<synchronous>, transform_indices = @transform_2, window_bounds = array<i64: 1, 16>}, {pipeline_mode = #tpu.pipeline_mode<synchronous>, transform_indices = @transform_3, window_bounds = array<i64: 1, 16>}, {transform_indices = @transform_4, window_bounds = array<i64: 2, 32>}]} {
    %c0 = arith.constant 0 : index
    %c0_0 = arith.constant 0 : index
    %c0_1 = arith.constant 0 : index
    %0 = vector.load %arg1[%c0, %c0_0, %c0_1] : memref<2x8x32xf32, #tpu.memory_space<vmem>>, vector<2x8x32xf32>
    %1 = vector.shape_cast %0 : vector<2x8x32xf32> to vector<16x32xf32>
    %c0_2 = arith.constant 0 : index
    %c0_3 = arith.constant 0 : index
    %2 = vector.load %arg2[%c0_2, %c0_3] : memref<32x16xf32, #tpu.memory_space<vmem>>, vector<32x16xf32>
    %cst = arith.constant dense<0.000000e+00> : vector<16x16xf32>
    %3 = tpu.matmul %1, %2, %cst {dimension_numbers = #tpu.dot_dimension_numbers<[1], [0], [0], [1], [0, 0, 1, 1], [], []>} : vector<16x32xf32>, vector<32x16xf32>, vector<16x16xf32> -> vector<16x16xf32>
    %c0_4 = arith.constant 0 : index
    %c0_5 = arith.constant 0 : index
    %4 = vector.load %arg3[%c0_4, %c0_5] : memref<1x16xf32, #tpu.memory_space<vmem>>, vector<1x16xf32>
    %5 = vector.broadcast %4 : vector<1x16xf32> to vector<16x16xf32>
    %6 = arith.addf %3, %5 : vector<16x16xf32>
    %7 = math.tanh %6 : vector<16x16xf32>
    %8 = vector.shape_cast %7 : vector<16x16xf32> to vector<2x8x16xf32>
    %c0_6 = arith.constant 0 : index
    %c0_7 = arith.constant 0 : index
    %9 = vector.load %arg4[%c0_6, %c0_7] : memref<1x16xf32, #tpu.memory_space<vmem>>, vector<1x16xf32>
    %10 = vector.shape_cast %9 : vector<1x16xf32> to vector<1x1x16xf32>
    %11 = vector.broadcast %10 : vector<1x1x16xf32> to vector<2x8x16xf32>
    %12 = arith.mulf %8, %11 : vector<2x8x16xf32>
    %cst_8 = arith.constant dense<0.000000e+00> : vector<2x8xf32>
    %13 = vector.multi_reduction <add>, %12, %cst_8 [2] : vector<2x8x16xf32> to vector<2x8xf32>
    %cst_9 = arith.constant dense<0xFF800000> : vector<2xf32>
    %14 = vector.multi_reduction <maximumf>, %13, %cst_9 [1] : vector<2x8xf32> to vector<2xf32>
    %15 = vector.shape_cast %14 : vector<2xf32> to vector<2x1xf32>
    %16 = vector.broadcast %15 : vector<2x1xf32> to vector<2x8xf32>
    %17 = arith.subf %13, %16 : vector<2x8xf32>
    %18 = math.exp %17 : vector<2x8xf32>
    %cst_10 = arith.constant dense<0.000000e+00> : vector<2xf32>
    %19 = vector.multi_reduction <add>, %18, %cst_10 [1] : vector<2x8xf32> to vector<2xf32>
    %20 = vector.shape_cast %19 : vector<2xf32> to vector<2x1xf32>
    %21 = tpu.reciprocal %20 : vector<2x1xf32> -> vector<2x1xf32>
    %22 = vector.broadcast %21 : vector<2x1xf32> to vector<2x8xf32>
    %23 = arith.mulf %18, %22 : vector<2x8xf32>
    %24 = vector.shape_cast %23 : vector<2x8xf32> to vector<2x1x8xf32>
    "tpu.trace_start"() <{level = 10 : i32, message = "bqs,bsi->bqi"}> : () -> ()
    %cst_11 = arith.constant dense<0.000000e+00> : vector<2x1x32xf32>
    %25 = tpu.matmul %24, %0, %cst_11 {dimension_numbers = #tpu.dot_dimension_numbers<[2], [1], [1], [2], [0, 0, 0, 1, 1, 2], [0], [0]>} : vector<2x1x8xf32>, vector<2x8x32xf32>, vector<2x1x32xf32> -> vector<2x1x32xf32>
    "tpu.trace_stop"() : () -> ()
    %26 = vector.shape_cast %25 : vector<2x1x32xf32> to vector<2x32xf32>
    %c0_12 = arith.constant 0 : index
    %c0_13 = arith.constant 0 : index
    %27 = vector.load %arg5[%c0_12, %c0_13] : memref<2x32xf32, #tpu.memory_space<vmem>>, vector<2x32xf32>
    tpu.vector_store %arg5[%c0_12, %c0_13], %26 {strides = array<i32>} : memref<2x32xf32, #tpu.memory_space<vmem>>, vector<2x32xf32>,
    return
  }
  func.func @transform_0(%arg0: i32) -> (i32, i32, i32) {
    %c0_i32 = arith.constant 0 : i32
    %c0_i32_0 = arith.constant 0 : i32
    %c0_i32_1 = arith.constant 0 : i32
    return %arg0, %c0_i32, %c0_i32_0 : i32, i32, i32
  }
  func.func @transform_1(%arg0: i32) -> (i32, i32) {
    %c0_i32 = arith.constant 0 : i32
    %c0_i32_0 = arith.constant 0 : i32
    %c0_i32_1 = arith.constant 0 : i32
    return %c0_i32, %c0_i32_0 : i32, i32
  }
  func.func @transform_2(%arg0: i32) -> (i32, i32) {
    %c0_i32 = arith.constant 0 : i32
    %c0_i32_0 = arith.constant 0 : i32
    %c0_i32_1 = arith.constant 0 : i32
    return %c0_i32, %c0_i32_0 : i32, i32
  }
  func.func @transform_3(%arg0: i32) -> (i32, i32) {
    %c0_i32 = arith.constant 0 : i32
    %c0_i32_0 = arith.constant 0 : i32
    %c0_i32_1 = arith.constant 0 : i32
    return %c0_i32, %c0_i32_0 : i32, i32
  }
  func.func @transform_4(%arg0: i32) -> (i32, i32) {
    %c0_i32 = arith.constant 0 : i32
    %c0_i32_0 = arith.constant 0 : i32
    return %arg0, %c0_i32 : i32, i32
  }
}

</mosaic_0001>

<llo_original>
// kernel: tpu_custom_call.1
$region0: #{tpu_custom_call.1}
  #allocation0 [shape = 'u32[]', space=smem, size = 0x4, offset = 0x4, fixed_abs, tag = 'smem constant byte address 0x4 - core index']
  #allocation1 [shape = 'u32[144,128]{1,0:T(1,128)}', space=vmem, size = 0x12000, scoped, tag = 'internal scratch']
  %s0 = inlined_call_operand.vmem [shape: f32[2,8,32], index: 0, kind: input, shape index: {}]
  %s1 = inlined_call_operand.vmem [shape: f32[32,16], index: 1, kind: input, shape index: {}]
  %s2 = inlined_call_operand.vmem [shape: f32[1,16], index: 2, kind: input, shape index: {}]
  %s3 = inlined_call_operand.vmem [shape: f32[1,16], index: 3, kind: input, shape index: {}]
  %s4 = inlined_call_operand.hbm [shape: f32[2,32], index: 4, kind: output, shape index: {}]
  %s5 = sld [smem:[#allocation0]]
  $region26: #{tpu_custom_call.1} parent=0
    _
  %s7 = ssub.s32 1, %s5
  %s8 = scalar_select 0, %s7, %s5
  $region1: #{tpu_custom_call.1} parent=0
    #allocation2 [shape = 'u8[1024]{0}', space=vmem, size = 0x400, scoped, tag = 'output window, operand 0, single buffered']
    #allocation3 [shape = 's32[1]{0}', space=sflag, size = 0x4, scoped, tag = 'scoped memory for tpu_custom_call.1']
    %9 = vsyncpa [#allocation3], 0
    // Predicated region
    $region2: #{tpu_custom_call.1} parent=1 // pred_check
      _
    $region3: #{tpu_custom_call.1} parent=1 // pred_check_branch
      %11 = sbr.rel (0) target = $region5
    $region4: #{tpu_custom_call.1} parent=1 // pred_region
      _
    $region5: #{tpu_custom_call.1} parent=1 // pred_fallthru
      _
    // Predicated region
    $region6: #{tpu_custom_call.1} parent=1 // pred_check
      _
    $region7: #{tpu_custom_call.1} parent=1 // pred_check_branch
      %13 = sbr.rel (0) target = $region9
    $region8: #{tpu_custom_call.1} parent=1 // pred_region
      _
    $region9: #{tpu_custom_call.1} parent=1 // pred_fallthru
      _
    // Predicated region
    $region10: #{tpu_custom_call.1} parent=1 // pred_check
      _
    $region11: #{tpu_custom_call.1} parent=1 // pred_check_branch
      %15 = sbr.rel (0) target = $region13
    $region12: #{tpu_custom_call.1} parent=1 // pred_region
      _
    $region13: #{tpu_custom_call.1} parent=1 // pred_fallthru
      _
    // Predicated region
    $region14: #{tpu_custom_call.1} parent=1 // pred_check
      _
    $region15: #{tpu_custom_call.1} parent=1 // pred_check_branch
      %17 = sbr.rel (0) target = $region17
    $region16: #{tpu_custom_call.1} parent=1 // pred_region
      _
    $region17: #{tpu_custom_call.1} parent=1 // pred_fallthru
      _
    %v18 = vld [vmem:[%s0] sm:$0xff]
    %v19 = vld [vmem:[%s0 + $0x8] sm:$0xff]
    %v20 = vld [vmem:[%s1] sm:$0xff]
    %v21 = vld [vmem:[%s1 + $0x8] sm:$0xff]
    %v22 = vld [vmem:[%s1 + $0x10] sm:$0xff]
    %v23 = vld [vmem:[%s1 + $0x18] sm:$0xff]
    %v24 = vld [vmem:[%s2] sm:$0x1]
    %v26 = vlaneseq
    %v27 = vshrl.u32 %v26, 7
    %v28 = vsub.s32 0, %v27
    %v29 = vrot.slane %v24, %v28
    %vm31 = vcmask 261120
    %v33 = vsel %vm31, %v18, 0
    %v36 = vsel %vm31, %v19, 0
    %38 = vmatprep.subr.mxu0 0.0
    %39 = vmatpush1.msra.mxu0 0.0
    %40 = vmatprep.subr.mxu0 0.0
    %41 = vmatpush1.msra.mxu0 0.0
    %42 = vmatprep.subr.mxu0 0.0
    %43 = vmatpush1.msra.mxu0 0.0
    %44 = vmatprep.subr.mxu0 0.0
    %45 = vmatpush1.msra.mxu0 0.0
    %46 = vmatprep.subr.mxu0 0.0
    %47 = vmatpush1.msra.mxu0 0.0
    %48 = vmatprep.subr.mxu0 0.0
    %49 = vmatpush1.msra.mxu0 0.0
    %50 = vmatprep.subr.mxu0 0.0
    %51 = vmatpush1.msra.mxu0 0.0
    %52 = vmatprep.subr.mxu0 0.0
    %53 = vmatpush1.msra.mxu0 0.0
    %54 = vmatprep.subr.mxu0 0.0
    %55 = vmatpush1.msra.mxu0 0.0
    %56 = vmatprep.subr.mxu0 0.0
    %57 = vmatpush1.msra.mxu0 0.0
    %58 = vmatprep.subr.mxu0 0.0
    %59 = vmatpush1.msra.mxu0 0.0
    %60 = vmatprep.subr.mxu0 0.0
    %61 = vmatpush1.msra.mxu0 0.0
    %62 = vmatprep.subr.mxu0 0.0
    %63 = vmatpush1.msra.mxu0 %v23
    %64 = vmatprep.subr.mxu0 0.0
    %65 = vmatpush1.msra.mxu0 %v22
    %66 = vmatprep.subr.mxu0 0.0
    %67 = vmatpush1.msra.mxu0 %v21
    %68 = vmatprep.subr.mxu0 0.0
    %69 = vmatpush1.msra.mxu0 %v20
    %70 = vmatprep.subr.mxu0 0.0
    %71 = vmatpush2.msra.mxu0 0.0
    %72 = vmatprep.subr.mxu0 0.0
    %73 = vmatpush2.msra.mxu0 0.0
    %74 = vmatprep.subr.mxu0 0.0
    %75 = vmatpush2.msra.mxu0 0.0
    %76 = vmatprep.subr.mxu0 0.0
    %77 = vmatpush2.msra.mxu0 0.0
    %78 = vmatprep.subr.mxu0 0.0
    %79 = vmatpush2.msra.mxu0 0.0
    %80 = vmatprep.subr.mxu0 0.0
    %81 = vmatpush2.msra.mxu0 0.0
    %82 = vmatprep.subr.mxu0 0.0
    %83 = vmatpush2.msra.mxu0 0.0
    %84 = vmatprep.subr.mxu0 0.0
    %85 = vmatpush2.msra.mxu0 0.0
    %86 = vmatprep.subr.mxu0 0.0
    %87 = vmatpush2.msra.mxu0 0.0
    %88 = vmatprep.subr.mxu0 0.0
    %89 = vmatpush2.msra.mxu0 0.0
    %90 = vmatprep.subr.mxu0 0.0
    %91 = vmatpush2.msra.mxu0 0.0
    %92 = vmatprep.subr.mxu0 0.0
    %93 = vmatpush2.msra.mxu0 0.0
    %94 = vmatprep.subr.mxu0 0.0
    %95 = vmatpush2.msra.mxu0 0.0
    %96 = vmatprep.subr.mxu0 0.0
    %97 = vmatpush2.msra.mxu0 0.0
    %98 = vmatprep.subr.mxu0 0.0
    %99 = vmatpush2.msra.mxu0 0.0
    %100 = vmatprep.subr.mxu0 0.0
    %101 = vmatpush2.msra.mxu0 0.0
    %102 = vmatprep.mubr.f32.mxu0 0.0
    %103 = vmatmul.mubr.f32.gmra.mxu0 %v33
    %v104 = vpop.f32.mrf.mxu0
    %v105 = vadd.f32 %v29, %v104
    %v106 = vpop.f32.mrf.mxu0
    %107 = vmatprep.mubr.f32.mxu0 0.0
    %108 = vmatmul.mubr.f32.gmra.mxu0 %v36
    %v109 = vpop.f32.mrf.mxu0
    %v110 = vadd.f32 %v29, %v109
    %v111 = vpop.f32.mrf.mxu0
    %112 = vdwg.mxu0
    %v113 = vtanh.pop %v105
    %v114 = vtanh.pop %v110
    %v115 = vld [vmem:[%s3] sm:$0x1]
    %v117 = vlaneseq
    %v118 = vshrl.u32 %v117, 7
    %v119 = vsub.s32 0, %v118
    %v120 = vrot.slane %v115, %v119
    %v122 = vmul.f32 %v113, %v120
    %v123 = vmul.f32 %v114, %v120
    %vm124 = vcmask 130048
    %v125 = vsel %vm124, %v122, 0.0
    %126 = vadd.xlane.f32.xlu0 %v125
    %v127 = vpop.xlane.xlu0 %126
    %v128 = vsel %vm124, %v123, 0.0
    %129 = vadd.xlane.f32.xlu0 %v128
    %v130 = vpop.xlane.xlu0 %129
    %v133 = vlaneseq
    %v134 = vand.u32 %v133, 127
    %v135 = vlaneseq
    %v136 = vshrl.u32 %v135, 7
    %v137 = vsub.s32 %v134, %v136
    %v138 = vrot.slane %v127, %v137
    %v139 = vlaneseq
    %v140 = vshrl.u32 %v139, 7
    %v141 = vsub.s32 %v134, %v140
    %v142 = vrot.slane %v130, %v141
    %vm143 = vcmask 1041409
    %v144 = vsel %vm143, %v142, %v138
    %vm146 = vcmask 58368
    %v147 = vsel %vm146, %v144, -inf
    %148 = vmax.xlane.f32.xlu0 %v147
    %v149 = vpop.xlane.xlu0 %148
    %v151 = vlaneseq
    %v152 = vshrl.u32 %v151, 7
    %v153 = vsub.s32 0, %v152
    %v154 = vrot.slane %v149, %v153
    %v155 = vlaneseq
    %v156 = vshrl.u32 %v155, 7
    %v157 = vsub.s32 1, %v156
    %v158 = vrot.slane %v149, %v157
    %v161 = vsub.f32 %v127, %v154
    %v162 = vsub.f32 %v130, %v158
    %v163 = vmul.f32 %v161, 1.442695
    %v164 = vpow.pop %v163
    %v165 = vmul.f32 %v162, 1.442695
    %v166 = vpow.pop %v165
    %169 = vset.pattern.permute.xlu0 0
    %170 = vperm.xlu0 %169, %v164
    %v171 = vpop.permute.xlu0 %170
    %172 = vset.pattern.permute.xlu0 0
    %173 = vperm.xlu0 %172, %v166
    %v174 = vpop.permute.xlu0 %173
    %v175 = vlaneseq
    %v176 = vshrl.u32 %v175, 7
    %v177 = vsub.s32 %v134, %v176
    %v178 = vrot.slane %v171, %v177
    %v179 = vlaneseq
    %v180 = vshrl.u32 %v179, 7
    %v181 = vsub.s32 %v134, %v180
    %v182 = vrot.slane %v174, %v181
    %v183 = vsel %vm143, %v182, %v178
    %v185 = vsel %vm146, %v183, 0.0
    %186 = vadd.xlane.f32.xlu0 %v185
    %v187 = vpop.xlane.xlu0 %186
    %v188 = vrcp.pop %v187
    %v190 = vlaneseq
    %v191 = vshrl.u32 %v190, 7
    %v192 = vsub.s32 0, %v191
    %v193 = vrot.slane %v188, %v192
    %v194 = vlaneseq
    %v195 = vshrl.u32 %v194, 7
    %v196 = vsub.s32 1, %v195
    %v197 = vrot.slane %v188, %v196
    %v200 = vmul.f32 %v164, %v193
    %v201 = vmul.f32 %v166, %v197
    %203 = vset.pattern.permute.xlu0 0
    %204 = vperm.xlu0 %203, %v200
    %v205 = vpop.permute.xlu0 %204
    %v206 = vlaneseq
    %v207 = vshrl.u32 %v206, 7
    %v208 = vsub.s32 %v134, %v207
    %v209 = vrot.slane %v205, %v208
    %vm210 = vcmask 64512
    %v211 = vsel %vm210, %v209, 0
    %213 = vmatprep.subr.mxu0 0.0
    %214 = vmatpush1.msra.mxu0 0.0
    %215 = vmatprep.subr.mxu0 0.0
    %216 = vmatpush1.msra.mxu0 0.0
    %217 = vmatprep.subr.mxu0 0.0
    %218 = vmatpush1.msra.mxu0 0.0
    %219 = vmatprep.subr.mxu0 0.0
    %220 = vmatpush1.msra.mxu0 0.0
    %221 = vmatprep.subr.mxu0 0.0
    %222 = vmatpush1.msra.mxu0 0.0
    %223 = vmatprep.subr.mxu0 0.0
    %224 = vmatpush1.msra.mxu0 0.0
    %225 = vmatprep.subr.mxu0 0.0
    %226 = vmatpush1.msra.mxu0 0.0
    %227 = vmatprep.subr.mxu0 0.0
    %228 = vmatpush1.msra.mxu0 0.0
    %229 = vmatprep.subr.mxu0 0.0
    %230 = vmatpush1.msra.mxu0 0.0
    %231 = vmatprep.subr.mxu0 0.0
    %232 = vmatpush1.msra.mxu0 0.0
    %233 = vmatprep.subr.mxu0 0.0
    %234 = vmatpush1.msra.mxu0 0.0
    %235 = vmatprep.subr.mxu0 0.0
    %236 = vmatpush1.msra.mxu0 0.0
    %237 = vmatprep.subr.mxu0 0.0
    %238 = vmatpush1.msra.mxu0 0.0
    %239 = vmatprep.subr.mxu0 0.0
    %240 = vmatpush1.msra.mxu0 0.0
    %241 = vmatprep.subr.mxu0 0.0
    %242 = vmatpush1.msra.mxu0 0.0
    %243 = vmatprep.subr.mxu0 0.0
    %244 = vmatpush1.msra.mxu0 %v18
    %245 = vmatprep.subr.mxu0 0.0
    %246 = vmatpush2.msra.mxu0 0.0
    %247 = vmatprep.subr.mxu0 0.0
    %248 = vmatpush2.msra.mxu0 0.0
    %249 = vmatprep.subr.mxu0 0.0
    %250 = vmatpush2.msra.mxu0 0.0
    %251 = vmatprep.subr.mxu0 0.0
    %252 = vmatpush2.msra.mxu0 0.0
    %253 = vmatprep.subr.mxu0 0.0
    %254 = vmatpush2.msra.mxu0 0.0
    %255 = vmatprep.subr.mxu0 0.0
    %256 = vmatpush2.msra.mxu0 0.0
    %257 = vmatprep.subr.mxu0 0.0
    %258 = vmatpush2.msra.mxu0 0.0
    %259 = vmatprep.subr.mxu0 0.0
    %260 = vmatpush2.msra.mxu0 0.0
    %261 = vmatprep.subr.mxu0 0.0
    %262 = vmatpush2.msra.mxu0 0.0
    %263 = vmatprep.subr.mxu0 0.0
    %264 = vmatpush2.msra.mxu0 0.0
    %265 = vmatprep.subr.mxu0 0.0
    %266 = vmatpush2.msra.mxu0 0.0
    %267 = vmatprep.subr.mxu0 0.0
    %268 = vmatpush2.msra.mxu0 0.0
    %269 = vmatprep.subr.mxu0 0.0
    %270 = vmatpush2.msra.mxu0 0.0
    %271 = vmatprep.subr.mxu0 0.0
    %272 = vmatpush2.msra.mxu0 0.0
    %273 = vmatprep.subr.mxu0 0.0
    %274 = vmatpush2.msra.mxu0 0.0
    %275 = vmatprep.subr.mxu0 0.0
    %276 = vmatpush2.msra.mxu0 0.0
    %277 = vmatprep.mubr.f32.mxu0 0.0
    %278 = vmatmul.mubr.f32.gmra.mxu0 %v211
    %v279 = vpop.f32.mrf.mxu0
    %v280 = vadd.f32 0.0, %v279
    %v281 = vpop.f32.mrf.mxu0
    %282 = vdwg.mxu0
    %284 = vset.pattern.permute.xlu0 0
    %285 = vperm.xlu0 %284, %v201
    %v286 = vpop.permute.xlu0 %285
    %v287 = vlaneseq
    %v288 = vshrl.u32 %v287, 7
    %v289 = vsub.s32 %v134, %v288
    %v290 = vrot.slane %v286, %v289
    %v291 = vsel %vm210, %v290, 0
    %293 = vmatprep.subr.mxu0 0.0
    %294 = vmatpush1.msra.mxu0 0.0
    %295 = vmatprep.subr.mxu0 0.0
    %296 = vmatpush1.msra.mxu0 0.0
    %297 = vmatprep.subr.mxu0 0.0
    %298 = vmatpush1.msra.mxu0 0.0
    %299 = vmatprep.subr.mxu0 0.0
    %300 = vmatpush1.msra.mxu0 0.0
    %301 = vmatprep.subr.mxu0 0.0
    %302 = vmatpush1.msra.mxu0 0.0
    %303 = vmatprep.subr.mxu0 0.0
    %304 = vmatpush1.msra.mxu0 0.0
    %305 = vmatprep.subr.mxu0 0.0
    %306 = vmatpush1.msra.mxu0 0.0
    %307 = vmatprep.subr.mxu0 0.0
    %308 = vmatpush1.msra.mxu0 0.0
    %309 = vmatprep.subr.mxu0 0.0
    %310 = vmatpush1.msra.mxu0 0.0
    %311 = vmatprep.subr.mxu0 0.0
    %312 = vmatpush1.msra.mxu0 0.0
    %313 = vmatprep.subr.mxu0 0.0
    %314 = vmatpush1.msra.mxu0 0.0
    %315 = vmatprep.subr.mxu0 0.0
    %316 = vmatpush1.msra.mxu0 0.0
    %317 = vmatprep.subr.mxu0 0.0
    %318 = vmatpush1.msra.mxu0 0.0
    %319 = vmatprep.subr.mxu0 0.0
    %320 = vmatpush1.msra.mxu0 0.0
    %321 = vmatprep.subr.mxu0 0.0
    %322 = vmatpush1.msra.mxu0 0.0
    %323 = vmatprep.subr.mxu0 0.0
    %324 = vmatpush1.msra.mxu0 %v19
    %325 = vmatprep.subr.mxu0 0.0
    %326 = vmatpush2.msra.mxu0 0.0
    %327 = vmatprep.subr.mxu0 0.0
    %328 = vmatpush2.msra.mxu0 0.0
    %329 = vmatprep.subr.mxu0 0.0
    %330 = vmatpush2.msra.mxu0 0.0
    %331 = vmatprep.subr.mxu0 0.0
    %332 = vmatpush2.msra.mxu0 0.0
    %333 = vmatprep.subr.mxu0 0.0
    %334 = vmatpush2.msra.mxu0 0.0
    %335 = vmatprep.subr.mxu0 0.0
    %336 = vmatpush2.msra.mxu0 0.0
    %337 = vmatprep.subr.mxu0 0.0
    %338 = vmatpush2.msra.mxu0 0.0
    %339 = vmatprep.subr.mxu0 0.0
    %340 = vmatpush2.msra.mxu0 0.0
    %341 = vmatprep.subr.mxu0 0.0
    %342 = vmatpush2.msra.mxu0 0.0
    %343 = vmatprep.subr.mxu0 0.0
    %344 = vmatpush2.msra.mxu0 0.0
    %345 = vmatprep.subr.mxu0 0.0
    %346 = vmatpush2.msra.mxu0 0.0
    %347 = vmatprep.subr.mxu0 0.0
    %348 = vmatpush2.msra.mxu0 0.0
    %349 = vmatprep.subr.mxu0 0.0
    %350 = vmatpush2.msra.mxu0 0.0
    %351 = vmatprep.subr.mxu0 0.0
    %352 = vmatpush2.msra.mxu0 0.0
    %353 = vmatprep.subr.mxu0 0.0
    %354 = vmatpush2.msra.mxu0 0.0
    %355 = vmatprep.subr.mxu0 0.0
    %356 = vmatpush2.msra.mxu0 0.0
    %357 = vmatprep.mubr.f32.mxu0 0.0
    %358 = vmatmul.mubr.f32.gmra.mxu0 %v291
    %v359 = vpop.f32.mrf.mxu0
    %v360 = vadd.f32 0.0, %v359
    %v361 = vpop.f32.mrf.mxu0
    %362 = vdwg.mxu0
    %v365 = vrot.slane %v360, 7
    %v366 = vsel %vm143, %v365, %v280
    %vm368 = vcmask 254976
    %369 = vst.msk [vmem:[#allocation2] sm:$0x3] %vm368, %v366
    // Predicated region
    $region18: #{tpu_custom_call.1} parent=1 // pred_check
      _
    $region19: #{tpu_custom_call.1} parent=1 // pred_check_branch
      %371 = sbr.rel (0) target = $region21
    $region20: #{tpu_custom_call.1} parent=1 // pred_region
      %s373 = ssub.s32 32, 32
      %374 = vsyncadd [#allocation3], %s373
      %s376 = sshll.u32 [#allocation2], 4
      %s377 = int_to_ptr.vmem [resolvable:$true] %s376
      %379 = dma.vmem_to_hbm [thread:$0]  %s377, 32, %s4, [#allocation3]
    $region21: #{tpu_custom_call.1} parent=1 // pred_fallthru
      _
    // Predicated region
    $region22: #{tpu_custom_call.1} parent=1 // pred_check
      _
    $region23: #{tpu_custom_call.1} parent=1 // pred_check_branch
      %381 = sbr.rel (0) target = $region25
    $region24: #{tpu_custom_call.1} parent=1 // pred_region
      %382 = dma.done [#allocation3], 32
    $region25: #{tpu_custom_call.1} parent=1 // pred_fallthru
      _
    %383 = vsyncpa [#allocation3], 1

</llo_original>
